<compile_context>
chip_gen: v6e
topology: v6e:2x2x1
jax: 0.10.0
libtpu: 0.0.40
codegen_flags: <defaults>
</compile_context>

<pallas_src>
import functools

import jax
import jax.numpy as jnp
from jax.experimental import pallas as pl
from jax.experimental.pallas import tpu as pltpu

_LANE = 128


def _round_up(n, m):
    return ((n + m - 1) // m) * m


# -----------------------------------------------------------------------------
# Capability probes (narrow try/except, cached, done once)
# -----------------------------------------------------------------------------
_BUFFERED_OK = None


def _buffered_supported():
    """Probe whether BlockSpec(pipeline_mode=pl.Buffered(1)) lowers/runs here."""
    global _BUFFERED_OK
    if _BUFFERED_OK is not None:
        return _BUFFERED_OK
    if not hasattr(pl, "Buffered"):
        _BUFFERED_OK = False
        return False
    try:
        def _k(x_ref, o_ref):
            o_ref[...] = x_ref[...]

        fn = pl.pallas_call(
            _k,
            out_shape=jax.ShapeDtypeStruct((8, _LANE), jnp.float32),
            grid=(1,),
            in_specs=[pl.BlockSpec((8, _LANE), lambda i: (0, 0),
                                   pipeline_mode=pl.Buffered(1))],
            out_specs=pl.BlockSpec((8, _LANE), lambda i: (0, 0)),
        )
        jax.block_until_ready(fn(jnp.zeros((8, _LANE), jnp.float32)))
        _BUFFERED_OK = True
    except Exception:          # restricted to this single capability probe
        _BUFFERED_OK = False
    return _BUFFERED_OK


def _num_tensorcores():
    """TensorCores addressable by one pallas_call (2 on v7x/megacore, else 1)."""
    n = 1
    try:
        dev = jax.devices()[0]
        v = getattr(dev, "num_cores", None)
        if isinstance(v, int) and v > 0:
            n = max(n, v)
    except Exception:
        pass
    try:
        info = pltpu.get_tpu_info()
        for attr in ("num_cores", "tensorcores_per_chip", "num_tensorcores"):
            v = getattr(info, attr, None)
            if isinstance(v, int) and v > 0:
                n = max(n, v)
    except Exception:
        pass
    return n


def _vmem_cap_bytes():
    try:
        return int(0.75 * pltpu.get_tpu_info().vmem_capacity_bytes)
    except Exception:
        return 48 << 20          # safe on v5e / v6e / v7x


# -----------------------------------------------------------------------------
# Parameter preparation (hoisted out of the per-call forward path)
# -----------------------------------------------------------------------------
def prepare_mlp_params(weights, biases, compute_dtype=jnp.bfloat16):
    """Pad + cast parameters ONCE and pack all biases into a single block.

    weights: list of (in_features, out_features) f32 arrays (transposed vs torch)
    biases : list of (out_features,) f32 arrays
    """
    cdt = jnp.dtype(compute_dtype)
    num_layers = len(weights)
    assert num_layers == len(biases)
    for a, b in zip(weights[:-1], weights[1:]):
        assert a.shape[1] == b.shape[0], "consecutive layer dims do not chain"

    p_in = [_round_up(int(w.shape[0]), _LANE) for w in weights]
    p_out = [_round_up(int(w.shape[1]), _LANE) for w in weights]
    max_do = max(p_out)

    weights_p, bias_rows = [], []
    for li, (w, b) in enumerate(zip(weights, biases)):
        di, do = w.shape
        weights_p.append(
            jnp.pad(w, ((0, p_in[li] - di), (0, p_out[li] - do))).astype(cdt))
        bias_rows.append(jnp.pad(b.astype(jnp.float32), (0, max_do - do)))
    bias_packed = jnp.stack(bias_rows, axis=0)       # (L, max_do_p) f32, one DMA

    return dict(
        weights=weights_p,
        bias_packed=bias_packed,
        p_in=tuple(p_in),
        p_out=tuple(p_out),
        in_dim=int(weights[0].shape[0]),
        out_dim=int(weights[-1].shape[1]),
        compute_dtype=cdt,
    )


# -----------------------------------------------------------------------------
# Kernels
# -----------------------------------------------------------------------------
def _apply_activation(acc, activation):
    if activation == "relu":
        return jnp.maximum(acc, 0.0)
    if activation == "silu":
        return acc * jax.nn.sigmoid(acc)
    raise ValueError(f"unsupported activation: {activation}")


def _make_fused_kernel(num_layers, p_out, compute_dtype, activation):
    """refs = (x, w0, ..., w_{L-1}, bias_packed, out)."""

    def kernel(*refs):
        x_ref = refs[0]
        w_refs = refs[1:1 + num_layers]
        b_ref = refs[1 + num_layers]
        o_ref = refs[-1]
        # TODO(synk): for very deep uniform MLPs, stack the (H,H) hidden weights into
        # one (L,H,H) ref and replace this unrolled loop with lax.fori_loop indexing
        # ref[l] so live ranges / VMEM pressure stay flat with depth.
        h = x_ref[...]                                   # compute dtype
        for li in range(num_layers):
            do_p = p_out[li]
            acc = jnp.dot(h, w_refs[li][...], preferred_element_type=jnp.float32)
            acc = acc + b_ref[li:li + 1, 0:do_p]          # (1, do_p) f32 broadcast
            if li < num_layers - 1:
                h = _apply_activation(acc, activation).astype(compute_dtype)
            else:
                h = acc                                   # last layer stays f32
        o_ref[...] = h.astype(o_ref.dtype)

    return kernel


def _linear_kernel(x_ref, w_ref, b_ref, o_ref, *, activation):
    acc = jnp.dot(x_ref[...], w_ref[...], preferred_element_type=jnp.float32)
    acc = acc + b_ref[...]
    if activation is not None:
        acc = _apply_activation(acc, activation)
    o_ref[...] = acc.astype(o_ref.dtype)


# -----------------------------------------------------------------------------
# Tiling / semantics helpers
# -----------------------------------------------------------------------------
def _pick_batch_tile(B, compute_dtype, num_cores, batch_tile, max_batch_tile):
    sub = 16 if jnp.dtype(compute_dtype).itemsize < 4 else 8   # bf16 packs 16 sublanes
    if batch_tile is not None:
        return max(sub, _round_up(batch_tile, sub))
    Bp0 = _round_up(B, sub)
    if num_cores > 1 and Bp0 > sub:
        # >= num_cores grid steps so both v7x TensorCores get work.
        return min(max_batch_tile, _round_up(pl.cdiv(Bp0, num_cores), sub))
    # Single TC (v5e/v6e): one big tile -> no per-step overhead, large MXU M.
    return min(Bp0, max_batch_tile)


def _dimension_semantics(grid_steps, num_cores):
    if (num_cores > 1 and grid_steps % num_cores == 0
            and hasattr(pltpu, "CORE_PARALLEL")):
        return (pltpu.CORE_PARALLEL,)     # actually shard batch axis across TCs (v7x)
    return ("parallel",) if grid_steps > 1 else ("arbitrary",)


def _resident_spec(shape, buffered1):
    if buffered1:
        # grid-invariant block -> single buffer halves its VMEM footprint
        return pl.BlockSpec(shape, lambda i: (0,) * len(shape),
                            pipeline_mode=pl.Buffered(1))
    return pl.BlockSpec(shape, lambda i: (0,) * len(shape))


# -----------------------------------------------------------------------------
# Forward passes
# -----------------------------------------------------------------------------
def mlp_forward_prepared(x, prep, *, batch_tile=None, max_batch_tile=512,
                         out_dtype=jnp.float32, activation="relu",
                         force_layerwise=False):
    """Forward pass using pre-padded params from prepare_mlp_params."""
    cdt = prep["compute_dtype"]
    num_layers = len(prep["weights"])
    p_in, p_out = prep["p_in"], prep["p_out"]
    B, in_dim = x.shape
    assert in_dim == prep["in_dim"]
    out_dim = prep["out_dim"]
    out_dtype = jnp.dtype(out_dtype)

    num_cores = _num_tensorcores()
    buffered1 = _buffered_supported()

    tb = _pick_batch_tile(B, cdt, num_cores, batch_tile, max_batch_tile)
    Bp = _round_up(B, tb)
    grid_steps = Bp // tb

    # ---- tight VMEM budget -----------------------------------------------------
    param_bytes = sum(w.nbytes for w in prep["weights"]) + prep["bias_packed"].nbytes
    param_factor = 1 if buffered1 else 2
    io_bytes = 2 * tb * p_in[0] * cdt.itemsize + 2 * tb * p_out[-1] * out_dtype.itemsize
    live_bytes = tb * max(p_out) * (4 + cdt.itemsize)       # f32 acc + cdt activation
    needed = param_factor * param_bytes + io_bytes + live_bytes + (2 << 20)
    cap = _vmem_cap_bytes()

    if force_layerwise or needed > cap:
        # Weight-streaming fallback (mandatory on v7x: 64 MiB VMEM per TensorCore).
        return _mlp_forward_layerwise(x, prep, tb=tb, grid_steps=grid_steps,
                                      num_cores=num_cores, out_dtype=out_dtype,
                                      activation=activation, buffered1=buffered1,
                                      cap=cap)

    vmem_limit = int(min(max(needed, 16 << 20), cap))

    x_p = jnp.pad(x, ((0, Bp - B), (0, p_in[0] - in_dim))).astype(cdt)

    in_specs = [pl.BlockSpec((tb, p_in[0]), lambda i: (i, 0))]
    # NOTE: if profiling shows the x-tile DMA exposed, raise buffering on this streamed
    # spec only (pl.Buffered(3)) while keeping weights at Buffered(1).
    in_specs += [_resident_spec(w.shape, buffered1) for w in prep["weights"]]
    in_specs += [_resident_spec(prep["bias_packed"].shape, buffered1)]
    out_spec = pl.BlockSpec((tb, p_out[-1]), lambda i: (i, 0))

    cost = pl.CostEstimate(
        flops=int(2 * B * sum(int(w.shape[0]) * int(w.shape[1])
                              for w in prep["weights"])),
        transcendentals=0,
        bytes_accessed=int(x.nbytes + param_bytes + B * out_dim * out_dtype.itemsize),
    )

    kernel = _make_fused_kernel(num_layers, p_out, cdt, activation)
    out_p = pl.pallas_call(
        kernel,
        out_shape=jax.ShapeDtypeStruct((Bp, p_out[-1]), out_dtype),
        grid_spec=pltpu.PrefetchScalarGridSpec(
            num_scalar_prefetch=0,
            grid=(grid_steps,),
            in_specs=in_specs,
            out_specs=out_spec,
        ),
        compiler_params=pltpu.CompilerParams(
            dimension_semantics=_dimension_semantics(grid_steps, num_cores),
            vmem_limit_bytes=vmem_limit,
        ),
        cost_estimate=cost,
    )(x_p, *prep["weights"], prep["bias_packed"])

    return out_p[:B, :out_dim]


def _mlp_forward_layerwise(x, prep, *, tb, grid_steps, num_cores, out_dtype,
                           activation, buffered1, cap):
    """One pallas_call per layer; only that layer's weight is VMEM-resident."""
    cdt = prep["compute_dtype"]
    p_in, p_out = prep["p_in"], prep["p_out"]
    num_layers = len(prep["weights"])
    B, in_dim = x.shape
    Bp = tb * grid_steps
    dim_sem = _dimension_semantics(grid_steps, num_cores)

    h = jnp.pad(x, ((0, Bp - B), (0, p_in[0] - in_dim))).astype(cdt)
    for li in range(num_layers):
        w = prep["weights"][li]
        b = prep["bias_packed"][li:li + 1, :p_out[li]]        # (1, do_p) f32
        last = li == num_layers - 1
        layer_out_dtype = out_dtype if last else cdt
        needed = ((1 if buffered1 else 2) * (w.nbytes + b.nbytes)
                  + 2 * tb * p_in[li] * cdt.itemsize
                  + 2 * tb * p_out[li] * jnp.dtype(layer_out_dtype).itemsize
                  + tb * p_out[li] * 4 + (2 << 20))
        vmem_limit = int(min(max(needed, 16 << 20), cap))
        h = pl.pallas_call(
            functools.partial(_linear_kernel,
                              activation=None if last else activation),
            out_shape=jax.ShapeDtypeStruct((Bp, p_out[li]), layer_out_dtype),
            grid_spec=pltpu.PrefetchScalarGridSpec(
                num_scalar_prefetch=0,
                grid=(grid_steps,),
                in_specs=[pl.BlockSpec((tb, p_in[li]), lambda i: (i, 0)),
                          _resident_spec(w.shape, buffered1),
                          _resident_spec(b.shape, buffered1)],
                out_specs=pl.BlockSpec((tb, p_out[li]), lambda i: (i, 0)),
            ),
            compiler_params=pltpu.CompilerParams(
                dimension_semantics=dim_sem,
                vmem_limit_bytes=vmem_limit,
            ),
        )(h, w, b)
    return h[:B, :prep["out_dim"]]


def mlp_forward(x, weights, biases, *, compute_dtype=jnp.bfloat16, **kwargs):
    """One-shot convenience API. For repeated inference, call prepare_mlp_params
    once and reuse the result with mlp_forward_prepared (avoids per-call
    parameter padding/casting traffic)."""
    prep = prepare_mlp_params(weights, biases, compute_dtype=compute_dtype)
    return mlp_forward_prepared(x, prep, **kwargs)


# -----------------------------------------------------------------------------
# Reference / init helpers
# -----------------------------------------------------------------------------
def init_mlp_params(key, in_dim, out_dim, hidden_layers=2, hidden_dim=256):
    """Mirrors torch.nn.Linear init; weights stored as (in_features, out_features)."""
    if not isinstance(hidden_dim, (list, tuple)):
        dims = ([(in_dim, hidden_dim)]
                + [(hidden_dim, hidden_dim)] * hidden_layers
                + [(hidden_dim, out_dim)])
    else:
        # Faithful to the torch constructor's list path (note: that path only chains
        # when hidden_dim[0] == hidden_dim[-1]; same quirk exists in the torch code).
        hd = list(hidden_dim)
        dims = list(zip([in_dim] + hd + hd[:1], hd + hd[-1:] + [out_dim]))

    weights, biases = [], []
    for (di, do) in dims:
        key, kw, kb = jax.random.split(key, 3)
        bound = 1.0 / (di ** 0.5)
        weights.append(jax.random.uniform(kw, (di, do), jnp.float32, -bound, bound))
        biases.append(jax.random.uniform(kb, (do,), jnp.float32, -bound, bound))
    return weights, biases


def mlp_reference(x, weights, biases, activation="relu"):
    """Pure-JAX f32 reference (same math as the torch nn.Sequential)."""
    h = x
    for i, (w, b) in enumerate(zip(weights, biases)):
        h = h @ w + b
        if i < len(weights) - 1:
            h = _apply_activation(h, activation)
    return h


# -----------------------------------------------------------------------------
if __name__ == "__main__":
    # Small, module-consistent shapes: batch=64, in_dim=16, hidden_dim=32,
    # hidden_layers=2, out_dim=8 -> 4 Linear layers with ReLU in between.
    key = jax.random.PRNGKey(0)
    key, kx = jax.random.split(key)

    B, in_dim, hidden_dim, hidden_layers, out_dim = 64, 16, 32, 2, 8
    x = jax.random.normal(kx, (B, in_dim), jnp.float32)
    weights, biases = init_mlp_params(key, in_dim, out_dim,
                                      hidden_layers=hidden_layers,
                                      hidden_dim=hidden_dim)
    ref = mlp_reference(x, weights, biases)

    # Exact-math fused path (f32 compute) using the prepare-once API — tight check.
    prep_f32 = prepare_mlp_params(weights, biases, compute_dtype=jnp.float32)
    out_f32 = jax.block_until_ready(mlp_forward_prepared(x, prep_f32))
    assert out_f32.shape == (B, out_dim), out_f32.shape
    assert jnp.allclose(out_f32, ref, atol=1e-4, rtol=1e-4), "f32 mismatch"

    # Second call reuses the already-padded params (no per-call param traffic).
    out_f32b = jax.block_until_ready(mlp_forward_prepared(x, prep_f32))
    assert jnp.allclose(out_f32b, ref, atol=1e-4, rtol=1e-4), "f32 repeat mismatch"

    # Default fast path (bf16 weights/acts, f32 MXU accumulation) — loose check.
    prep_bf16 = prepare_mlp_params(weights, biases)
    out_bf16 = jax.block_until_ready(mlp_forward_prepared(x, prep_bf16))
    assert out_bf16.shape == (B, out_dim), out_bf16.shape
    assert jnp.allclose(out_bf16, ref, atol=5e-2, rtol=5e-2), "bf16 mismatch"

    # Optional bf16 output (halves lane-padded writeback) — loose check.
    out_bf16o = jax.block_until_ready(
        mlp_forward_prepared(x, prep_bf16, out_dtype=jnp.bfloat16))
    assert out_bf16o.dtype == jnp.bfloat16
    assert jnp.allclose(out_bf16o.astype(jnp.float32), ref, atol=7e-2, rtol=7e-2), \
        "bf16-out mismatch"

    # Weight-streaming fallback (per-layer pallas_calls), exercised explicitly.
    out_lw = jax.block_until_ready(
        mlp_forward_prepared(x, prep_f32, force_layerwise=True))
    assert jnp.allclose(out_lw, ref, atol=1e-4, rtol=1e-4), "layerwise mismatch"

    print("KERNEL_OK")
</pallas_src>

<mosaic_0001>
module attributes {stable_mosaic.version = 11 : i64} {
  func.func @_k(%arg0: i32, %arg1: memref<8x128xf32, #tpu.memory_space<vmem>>, %arg2: memref<8x128xf32, #tpu.memory_space<vmem>>) attributes {dimension_semantics = [#tpu.dimension_semantics<arbitrary>], iteration_bounds = array<i64: 1>, scalar_prefetch = 0 : i64, scratch_operands = 0 : i64, tpu.core_type = #tpu.core_type<tc>, window_params = [{pipeline_mode = #tpu.pipeline_mode<synchronous>, transform_indices = @transform_0, window_bounds = array<i64: 8, 128>}, {pipeline_mode = #tpu.pipeline_mode<synchronous>, transform_indices = @transform_1, window_bounds = array<i64: 8, 128>}]} {
    %c0 = arith.constant 0 : index
    %c0_0 = arith.constant 0 : index
    %0 = vector.load %arg1[%c0, %c0_0] : memref<8x128xf32, #tpu.memory_space<vmem>>, vector<8x128xf32>
    %c0_1 = arith.constant 0 : index
    %c0_2 = arith.constant 0 : index
    %1 = vector.load %arg2[%c0_1, %c0_2] : memref<8x128xf32, #tpu.memory_space<vmem>>, vector<8x128xf32>
    tpu.vector_store %arg2[%c0_1, %c0_2], %0 {strides = array<i32>} : memref<8x128xf32, #tpu.memory_space<vmem>>, vector<8x128xf32>,
    return
  }
  func.func @transform_0(%arg0: i32) -> (i32, i32) {
    %c0_i32 = arith.constant 0 : i32
    %c0_i32_0 = arith.constant 0 : i32
    %c0_i32_1 = arith.constant 0 : i32
    return %c0_i32, %c0_i32_0 : i32, i32
  }
  func.func @transform_1(%arg0: i32) -> (i32, i32) {
    %c0_i32 = arith.constant 0 : i32
    %c0_i32_0 = arith.constant 0 : i32
    %c0_i32_1 = arith.constant 0 : i32
    return %c0_i32, %c0_i32_0 : i32, i32
  }
}

module attributes {stable_mosaic.version = 11 : i64} {
  func.func @kernel(%arg0: i32, %arg1: memref<64x128xf32, #tpu.memory_space<vmem>>, %arg2: memref<128x128xf32, #tpu.memory_space<vmem>>, %arg3: memref<128x128xf32, #tpu.memory_space<vmem>>, %arg4: memref<128x128xf32, #tpu.memory_space<vmem>>, %arg5: memref<128x128xf32, #tpu.memory_space<vmem>>, %arg6: memref<4x128xf32, #tpu.memory_space<vmem>>, %arg7: memref<64x128xf32, #tpu.memory_space<vmem>>) attributes {dimension_semantics = [#tpu.dimension_semantics<arbitrary>], iteration_bounds = array<i64: 1>, scalar_prefetch = 0 : i64, scratch_operands = 0 : i64, tpu.core_type = #tpu.core_type<tc>, window_params = [{transform_indices = @transform_0, window_bounds = array<i64: 64, 128>}, {pipeline_mode = #tpu.pipeline_mode<synchronous>, transform_indices = @transform_1, window_bounds = array<i64: 128, 128>}, {pipeline_mode = #tpu.pipeline_mode<synchronous>, transform_indices = @transform_2, window_bounds = array<i64: 128, 128>}, {pipeline_mode = #tpu.pipeline_mode<synchronous>, transform_indices = @transform_3, window_bounds = array<i64: 128, 128>}, {pipeline_mode = #tpu.pipeline_mode<synchronous>, transform_indices = @transform_4, window_bounds = array<i64: 128, 128>}, {pipeline_mode = #tpu.pipeline_mode<synchronous>, transform_indices = @transform_5, window_bounds = array<i64: 4, 128>}, {transform_indices = @transform_6, window_bounds = array<i64: 64, 128>}]} {
    %c0 = arith.constant 0 : index
    %c0_0 = arith.constant 0 : index
    %0 = vector.load %arg1[%c0, %c0_0] : memref<64x128xf32, #tpu.memory_space<vmem>>, vector<64x128xf32>
    %c0_1 = arith.constant 0 : index
    %c0_2 = arith.constant 0 : index
    %1 = vector.load %arg2[%c0_1, %c0_2] : memref<128x128xf32, #tpu.memory_space<vmem>>, vector<128x128xf32>
    %cst = arith.constant dense<0.000000e+00> : vector<64x128xf32>
    %2 = tpu.matmul %0, %1, %cst {dimension_numbers = #tpu.dot_dimension_numbers<[1], [0], [0], [1], [0, 0, 1, 1], [], []>} : vector<64x128xf32>, vector<128x128xf32>, vector<64x128xf32> -> vector<64x128xf32>
    %c0_3 = arith.constant 0 : index
    %c0_4 = arith.constant 0 : index
    %3 = vector.load %arg6[%c0_3, %c0_4] : memref<4x128xf32, #tpu.memory_space<vmem>>, vector<1x128xf32>
    %4 = vector.broadcast %3 : vector<1x128xf32> to vector<64x128xf32>
    %5 = arith.addf %2, %4 : vector<64x128xf32>
    %cst_5 = arith.constant 0.000000e+00 : f32
    %6 = vector.broadcast %cst_5 : f32 to vector<64x128xf32>
    %7 = arith.maximumf %5, %6 : vector<64x128xf32>
    %c0_6 = arith.constant 0 : index
    %c0_7 = arith.constant 0 : index
    %8 = vector.load %arg3[%c0_6, %c0_7] : memref<128x128xf32, #tpu.memory_space<vmem>>, vector<128x128xf32>
    %cst_8 = arith.constant dense<0.000000e+00> : vector<64x128xf32>
    %9 = tpu.matmul %7, %8, %cst_8 {dimension_numbers = #tpu.dot_dimension_numbers<[1], [0], [0], [1], [0, 0, 1, 1], [], []>} : vector<64x128xf32>, vector<128x128xf32>, vector<64x128xf32> -> vector<64x128xf32>
    %c1 = arith.constant 1 : index
    %c0_9 = arith.constant 0 : index
    %10 = vector.load %arg6[%c1, %c0_9] : memref<4x128xf32, #tpu.memory_space<vmem>>, vector<1x128xf32>
    %11 = vector.broadcast %10 : vector<1x128xf32> to vector<64x128xf32>
    %12 = arith.addf %9, %11 : vector<64x128xf32>
    %cst_10 = arith.constant 0.000000e+00 : f32
    %13 = vector.broadcast %cst_10 : f32 to vector<64x128xf32>
    %14 = arith.maximumf %12, %13 : vector<64x128xf32>
    %c0_11 = arith.constant 0 : index
    %c0_12 = arith.constant 0 : index
    %15 = vector.load %arg4[%c0_11, %c0_12] : memref<128x128xf32, #tpu.memory_space<vmem>>, vector<128x128xf32>
    %cst_13 = arith.constant dense<0.000000e+00> : vector<64x128xf32>
    %16 = tpu.matmul %14, %15, %cst_13 {dimension_numbers = #tpu.dot_dimension_numbers<[1], [0], [0], [1], [0, 0, 1, 1], [], []>} : vector<64x128xf32>, vector<128x128xf32>, vector<64x128xf32> -> vector<64x128xf32>
    %c2 = arith.constant 2 : index
    %c0_14 = arith.constant 0 : index
    %17 = vector.load %arg6[%c2, %c0_14] : memref<4x128xf32, #tpu.memory_space<vmem>>, vector<1x128xf32>
    %18 = vector.broadcast %17 : vector<1x128xf32> to vector<64x128xf32>
    %19 = arith.addf %16, %18 : vector<64x128xf32>
    %cst_15 = arith.constant 0.000000e+00 : f32
    %20 = vector.broadcast %cst_15 : f32 to vector<64x128xf32>
    %21 = arith.maximumf %19, %20 : vector<64x128xf32>
    %c0_16 = arith.constant 0 : index
    %c0_17 = arith.constant 0 : index
    %22 = vector.load %arg5[%c0_16, %c0_17] : memref<128x128xf32, #tpu.memory_space<vmem>>, vector<128x128xf32>
    %cst_18 = arith.constant dense<0.000000e+00> : vector<64x128xf32>
    %23 = tpu.matmul %21, %22, %cst_18 {dimension_numbers = #tpu.dot_dimension_numbers<[1], [0], [0], [1], [0, 0, 1, 1], [], []>} : vector<64x128xf32>, vector<128x128xf32>, vector<64x128xf32> -> vector<64x128xf32>
    %c3 = arith.constant 3 : index
    %c0_19 = arith.constant 0 : index
    %24 = vector.load %arg6[%c3, %c0_19] : memref<4x128xf32, #tpu.memory_space<vmem>>, vector<1x128xf32>
    %25 = vector.broadcast %24 : vector<1x128xf32> to vector<64x128xf32>
    %26 = arith.addf %23, %25 : vector<64x128xf32>
    %c0_20 = arith.constant 0 : index
    %c0_21 = arith.constant 0 : index
    %27 = vector.load %arg7[%c0_20, %c0_21] : memref<64x128xf32, #tpu.memory_space<vmem>>, vector<64x128xf32>
    tpu.vector_store %arg7[%c0_20, %c0_21], %26 {strides = array<i32>} : memref<64x128xf32, #tpu.memory_space<vmem>>, vector<64x128xf32>,
    return
  }
  func.func @transform_0(%arg0: i32) -> (i32, i32) {
    %c0_i32 = arith.constant 0 : i32
    %c0_i32_0 = arith.constant 0 : i32
    return %arg0, %c0_i32 : i32, i32
  }
  func.func @transform_1(%arg0: i32) -> (i32, i32) {
    %c0_i32 = arith.constant 0 : i32
    %c0_i32_0 = arith.constant 0 : i32
    %c0_i32_1 = arith.constant 0 : i32
    return %c0_i32, %c0_i32_0 : i32, i32
  }
  func.func @transform_2(%arg0: i32) -> (i32, i32) {
    %c0_i32 = arith.constant 0 : i32
    %c0_i32_0 = arith.constant 0 : i32
    %c0_i32_1 = arith.constant 0 : i32
    return %c0_i32, %c0_i32_0 : i32, i32
  }
  func.func @transform_3(%arg0: i32) -> (i32, i32) {
    %c0_i32 = arith.constant 0 : i32
    %c0_i32_0 = arith.constant 0 : i32
    %c0_i32_1 = arith.constant 0 : i32
    return %c0_i32, %c0_i32_0 : i32, i32
  }
  func.func @transform_4(%arg0: i32) -> (i32, i32) {
    %c0_i32 = arith.constant 0 : i32
    %c0_i32_0 = arith.constant 0 : i32
    %c0_i32_1 = arith.constant 0 : i32
    return %c0_i32, %c0_i32_0 : i32, i32
  }
  func.func @transform_5(%arg0: i32) -> (i32, i32) {
    %c0_i32 = arith.constant 0 : i32
    %c0_i32_0 = arith.constant 0 : i32
    %c0_i32_1 = arith.constant 0 : i32
    return %c0_i32, %c0_i32_0 : i32, i32
  }
  func.func @transform_6(%arg0: i32) -> (i32, i32) {
    %c0_i32 = arith.constant 0 : i32
    %c0_i32_0 = arith.constant 0 : i32
    return %arg0, %c0_i32 : i32, i32
  }
}

</mosaic_0001>

<llo_original>
// kernel: tpu_custom_call.1
$region0: #{tpu_custom_call.1}
  #allocation0 [shape = 'u32[]', space=smem, size = 0x4, offset = 0x4, fixed_abs, tag = 'smem constant byte address 0x4 - core index']
  #allocation1 [shape = 'u32[144,128]{1,0:T(1,128)}', space=vmem, size = 0x12000, scoped, tag = 'internal scratch']
  %s0 = inlined_call_operand.hbm [shape: f32[8,128], index: 0, kind: input, shape index: {}]
  %s1 = inlined_call_operand.hbm [shape: f32[8,128], index: 1, kind: output, shape index: {}]
  %s2 = sld [smem:[#allocation0]]
  $region18: #{tpu_custom_call.1} parent=0
    _
  %s4 = ssub.s32 1, %s2
  %s5 = scalar_select 0, %s4, %s2
  $region1: #{tpu_custom_call.1} parent=0
    #allocation2 [shape = 'u8[4096]{0}', space=vmem, size = 0x1000, scoped, tag = 'input window, operand 0, single buffered']
    #allocation3 [shape = 's32[1]{0}', space=sflag, size = 0x4, scoped, tag = 'scoped memory for tpu_custom_call.1']
    #allocation4 [shape = 's32[1]{0}', space=sflag, size = 0x4, scoped, tag = 'scoped memory for tpu_custom_call.1']
    #allocation5 [shape = 'u8[4096]{0}', space=vmem, size = 0x1000, scoped, tag = 'output window, operand 0, single buffered']
    %6 = vsyncpa [#allocation3], 0
    %7 = vsyncpa [#allocation4], 0
    // Predicated region
    $region2: #{tpu_custom_call.1} parent=1 // pred_check
      _
    $region3: #{tpu_custom_call.1} parent=1 // pred_check_branch
      %9 = sbr.rel (0) target = $region5
    $region4: #{tpu_custom_call.1} parent=1 // pred_region
      %s11 = ssub.s32 128, 128
      %12 = vsyncadd [#allocation3], %s11
      %s14 = sshll.u32 [#allocation2], 4
      %s15 = int_to_ptr.vmem [resolvable:$true] %s14
      %17 = dma.hbm_to_vmem [thread:$0]  %s0, 128, %s15, [#allocation3]
    $region5: #{tpu_custom_call.1} parent=1 // pred_fallthru
      _
    // Predicated region
    $region6: #{tpu_custom_call.1} parent=1 // pred_check
      _
    $region7: #{tpu_custom_call.1} parent=1 // pred_check_branch
      %19 = sbr.rel (0) target = $region9
    $region8: #{tpu_custom_call.1} parent=1 // pred_region
      %20 = dma.done [#allocation3], 128
    $region9: #{tpu_custom_call.1} parent=1 // pred_fallthru
      _
    %v21 = vld [vmem:[#allocation2] sm:$0xff]
    %22 = vst [vmem:[#allocation5] sm:$0xff] %v21
    // Predicated region
    $region10: #{tpu_custom_call.1} parent=1 // pred_check
      _
    $region11: #{tpu_custom_call.1} parent=1 // pred_check_branch
      %24 = sbr.rel (0) target = $region13
    $region12: #{tpu_custom_call.1} parent=1 // pred_region
      %s26 = ssub.s32 128, 128
      %27 = vsyncadd [#allocation4], %s26
      %s29 = sshll.u32 [#allocation5], 4
      %s30 = int_to_ptr.vmem [resolvable:$true] %s29
      %32 = dma.vmem_to_hbm [thread:$0]  %s30, 128, %s1, [#allocation4]
    $region13: #{tpu_custom_call.1} parent=1 // pred_fallthru
      _
    // Predicated region
    $region14: #{tpu_custom_call.1} parent=1 // pred_check
      _
    $region15: #{tpu_custom_call.1} parent=1 // pred_check_branch
      %34 = sbr.rel (0) target = $region17
    $region16: #{tpu_custom_call.1} parent=1 // pred_region
      %35 = dma.done [#allocation4], 128
    $region17: #{tpu_custom_call.1} parent=1 // pred_fallthru
      _
    %36 = vsyncpa [#allocation3], 1
    %37 = vsyncpa [#allocation4], 1

// kernel: tpu_custom_call.1
$region0: #{tpu_custom_call.1}
  #allocation0 [shape = 'u32[]', space=smem, size = 0x4, offset = 0x4, fixed_abs, tag = 'smem constant byte address 0x4 - core index']
  #allocation1 [shape = 'u32[144,128]{1,0:T(1,128)}', space=vmem, size = 0x12000, scoped, tag = 'internal scratch']
  %s0 = inlined_call_operand.hbm [shape: f32[64,128], index: 0, kind: input, shape index: {}]
  %s1 = inlined_call_operand.hbm [shape: f32[128,128], index: 1, kind: input, shape index: {}]
  %s2 = inlined_call_operand.hbm [shape: f32[128,128], index: 2, kind: input, shape index: {}]
  %s3 = inlined_call_operand.hbm [shape: f32[128,128], index: 3, kind: input, shape index: {}]
  %s4 = inlined_call_operand.hbm [shape: f32[128,128], index: 4, kind: input, shape index: {}]
  %s5 = inlined_call_operand.vmem [shape: f32[4,128], index: 5, kind: input, shape index: {}]
  %s6 = inlined_call_operand.hbm [shape: f32[64,128], index: 6, kind: output, shape index: {}]
  %s7 = sld [smem:[#allocation0]]
  $region54: #{tpu_custom_call.1} parent=0
    _
  %s9 = ssub.s32 1, %s7
  %s10 = scalar_select 0, %s9, %s7
  $region1: #{tpu_custom_call.1} parent=0
    #allocation2 [shape = 'u8[32768]{0}', space=vmem, size = 0x8000, scoped, tag = 'input window, operand 0, single buffered']
    #allocation3 [shape = 's32[1]{0}', space=sflag, size = 0x4, scoped, tag = 'scoped memory for tpu_custom_call.1']
    #allocation4 [shape = 's32[1]{0}', space=sflag, size = 0x4, scoped, tag = 'scoped memory for tpu_custom_call.1']
    #allocation5 [shape = 'u8[65536]{0}', space=vmem, size = 0x10000, scoped, tag = 'input window, operand 1, single buffered']
    #allocation6 [shape = 's32[1]{0}', space=sflag, size = 0x4, scoped, tag = 'scoped memory for tpu_custom_call.1']
    #allocation7 [shape = 'u8[65536]{0}', space=vmem, size = 0x10000, scoped, tag = 'input window, operand 2, single buffered']
    #allocation8 [shape = 'u8[65536]{0}', space=vmem, size = 0x10000, scoped, tag = 'input window, operand 3, single buffered']
    #allocation9 [shape = 's32[1]{0}', space=sflag, size = 0x4, scoped, tag = 'scoped memory for tpu_custom_call.1']
    #allocation10 [shape = 'u8[65536]{0}', space=vmem, size = 0x10000, scoped, tag = 'input window, operand 4, single buffered']
    #allocation11 [shape = 'u8[32768]{0}', space=vmem, size = 0x8000, scoped, tag = 'output window, operand 0, single buffered']
    %11 = vsyncpa [#allocation3], 0
    %12 = vsyncpa [#allocation6], 0
    %13 = vsyncpa [#allocation9], 0
    %14 = vsyncpa [#allocation4], 0
    // Predicated region
    $region2: #{tpu_custom_call.1} parent=1 // pred_check
      _
    $region3: #{tpu_custom_call.1} parent=1 // pred_check_branch
      %16 = sbr.rel (0) target = $region5
    $region4: #{tpu_custom_call.1} parent=1 // pred_region
      %s18 = ssub.s32 1024, 1024
      %19 = vsyncadd [#allocation3], %s18
      %s20 = sshll.u32 [#allocation2], 4
      %s21 = int_to_ptr.vmem [resolvable:$true] %s20
      %26 = dma.hbm_to_vmem [thread:$0]  %s0, 1024, %s21, [#allocation3], 128, 128, 8
    $region5: #{tpu_custom_call.1} parent=1 // pred_fallthru
      _
    // Predicated region
    $region6: #{tpu_custom_call.1} parent=1 // pred_check
      _
    $region7: #{tpu_custom_call.1} parent=1 // pred_check_branch
      %28 = sbr.rel (0) target = $region9
    $region8: #{tpu_custom_call.1} parent=1 // pred_region
      %s30 = ssub.s32 2048, 2048
      %31 = vsyncadd [#allocation6], %s30
      %s32 = sshll.u32 [#allocation5], 4
      %s33 = int_to_ptr.vmem [resolvable:$true] %s32
      %38 = dma.hbm_to_vmem [thread:$0]  %s1, 2048, %s33, [#allocation6], 128, 128, 8
    $region9: #{tpu_custom_call.1} parent=1 // pred_fallthru
      _
    // Predicated region
    $region10: #{tpu_custom_call.1} parent=1 // pred_check
      _
    $region11: #{tpu_custom_call.1} parent=1 // pred_check_branch
      %40 = sbr.rel (0) target = $region13
    $region12: #{tpu_custom_call.1} parent=1 // pred_region
      %s42 = ssub.s32 2048, 2048
      %43 = vsyncadd [#allocation6], %s42
      %s44 = sshll.u32 [#allocation7], 4
      %s45 = int_to_ptr.vmem [resolvable:$true] %s44
      %50 = dma.hbm_to_vmem [thread:$0]  %s2, 2048, %s45, [#allocation6], 128, 128, 8
    $region13: #{tpu_custom_call.1} parent=1 // pred_fallthru
      _
    // Predicated region
    $region14: #{tpu_custom_call.1} parent=1 // pred_check
      _
    $region15: #{tpu_custom_call.1} parent=1 // pred_check_branch
      %52 = sbr.rel (0) target = $region17
    $region16: #{tpu_custom_call.1} parent=1 // pred_region
      %s54 = ssub.s32 2048, 2048
      %55 = vsyncadd [#allocation9], %s54
      %s56 = sshll.u32 [#allocation8], 4
      %s57 = int_to_ptr.vmem [resolvable:$true] %s56
      %62 = dma.hbm_to_vmem [thread:$0]  %s3, 2048, %s57, [#allocation9], 128, 128, 8
    $region17: #{tpu_custom_call.1} parent=1 // pred_fallthru
      _
    // Predicated region
    $region18: #{tpu_custom_call.1} parent=1 // pred_check
      _
    $region19: #{tpu_custom_call.1} parent=1 // pred_check_branch
      %64 = sbr.rel (0) target = $region21
    $region20: #{tpu_custom_call.1} parent=1 // pred_region
      %s66 = ssub.s32 2048, 2048
      %67 = vsyncadd [#allocation9], %s66
      %s68 = sshll.u32 [#allocation10], 4
      %s69 = int_to_ptr.vmem [resolvable:$true] %s68
      %74 = dma.hbm_to_vmem [thread:$0]  %s4, 2048, %s69, [#allocation9], 128, 128, 8
    $region21: #{tpu_custom_call.1} parent=1 // pred_fallthru
      _
    // Predicated region
    $region22: #{tpu_custom_call.1} parent=1 // pred_check
      _
    $region23: #{tpu_custom_call.1} parent=1 // pred_check_branch
      %76 = sbr.rel (0) target = $region25
    $region24: #{tpu_custom_call.1} parent=1 // pred_region
      _
    $region25: #{tpu_custom_call.1} parent=1 // pred_fallthru
      _
    // Predicated region
    $region26: #{tpu_custom_call.1} parent=1 // pred_check
      _
    $region27: #{tpu_custom_call.1} parent=1 // pred_check_branch
      %78 = sbr.rel (0) target = $region29
    $region28: #{tpu_custom_call.1} parent=1 // pred_region
      %79 = dma.done [#allocation3], 1024
    $region29: #{tpu_custom_call.1} parent=1 // pred_fallthru
      _
    // Predicated region
    $region30: #{tpu_custom_call.1} parent=1 // pred_check
      _
    $region31: #{tpu_custom_call.1} parent=1 // pred_check_branch
      %81 = sbr.rel (0) target = $region33
    $region32: #{tpu_custom_call.1} parent=1 // pred_region
      %82 = dma.done [#allocation6], 2048
    $region33: #{tpu_custom_call.1} parent=1 // pred_fallthru
      _
    // Predicated region
    $region34: #{tpu_custom_call.1} parent=1 // pred_check
      _
    $region35: #{tpu_custom_call.1} parent=1 // pred_check_branch
      %84 = sbr.rel (0) target = $region37
    $region36: #{tpu_custom_call.1} parent=1 // pred_region
      %85 = dma.done [#allocation6], 2048
    $region37: #{tpu_custom_call.1} parent=1 // pred_fallthru
      _
    // Predicated region
    $region38: #{tpu_custom_call.1} parent=1 // pred_check
      _
    $region39: #{tpu_custom_call.1} parent=1 // pred_check_branch
      %87 = sbr.rel (0) target = $region41
    $region40: #{tpu_custom_call.1} parent=1 // pred_region
      %88 = dma.done [#allocation9], 2048
    $region41: #{tpu_custom_call.1} parent=1 // pred_fallthru
      _
    // Predicated region
    $region42: #{tpu_custom_call.1} parent=1 // pred_check
      _
    $region43: #{tpu_custom_call.1} parent=1 // pred_check_branch
      %90 = sbr.rel (0) target = $region45
    $region44: #{tpu_custom_call.1} parent=1 // pred_region
      %91 = dma.done [#allocation9], 2048
    $region45: #{tpu_custom_call.1} parent=1 // pred_fallthru
      _
    %v92 = vld [vmem:[#allocation2] sm:$0xff]
    %v93 = vld [vmem:[#allocation2 + $0x8] sm:$0xff]
    %v94 = vld [vmem:[#allocation2 + $0x10] sm:$0xff]
    %v95 = vld [vmem:[#allocation2 + $0x18] sm:$0xff]
    %v96 = vld [vmem:[#allocation2 + $0x20] sm:$0xff]
    %v97 = vld [vmem:[#allocation2 + $0x28] sm:$0xff]
    %v98 = vld [vmem:[#allocation2 + $0x30] sm:$0xff]
    %v99 = vld [vmem:[#allocation2 + $0x38] sm:$0xff]
    %v100 = vld [vmem:[#allocation5] sm:$0xff]
    %v101 = vld [vmem:[#allocation5 + $0x8] sm:$0xff]
    %v102 = vld [vmem:[#allocation5 + $0x10] sm:$0xff]
    %v103 = vld [vmem:[#allocation5 + $0x18] sm:$0xff]
    %v104 = vld [vmem:[#allocation5 + $0x20] sm:$0xff]
    %v105 = vld [vmem:[#allocation5 + $0x28] sm:$0xff]
    %v106 = vld [vmem:[#allocation5 + $0x30] sm:$0xff]
    %v107 = vld [vmem:[#allocation5 + $0x38] sm:$0xff]
    %v108 = vld [vmem:[#allocation5 + $0x40] sm:$0xff]
    %v109 = vld [vmem:[#allocation5 + $0x48] sm:$0xff]
    %v110 = vld [vmem:[#allocation5 + $0x50] sm:$0xff]
    %v111 = vld [vmem:[#allocation5 + $0x58] sm:$0xff]
    %v112 = vld [vmem:[#allocation5 + $0x60] sm:$0xff]
    %v113 = vld [vmem:[#allocation5 + $0x68] sm:$0xff]
    %v114 = vld [vmem:[#allocation5 + $0x70] sm:$0xff]
    %v115 = vld [vmem:[#allocation5 + $0x78] sm:$0xff]
    %v116 = vld [vmem:[%s5] sm:$0x1]
    %v117 = vlaneseq
    %v118 = vshrl.u32 %v117, 7
    %v119 = vsub.s32 0, %v118
    %v120 = vrot.slane %v116, %v119
    %121 = vmatprep.subr.mxu0 0.0
    %122 = vmatpush1.msra.mxu0 %v115
    %123 = vmatprep.subr.mxu0 0.0
    %124 = vmatpush1.msra.mxu0 %v114
    %125 = vmatprep.subr.mxu0 0.0
    %126 = vmatpush1.msra.mxu0 %v113
    %127 = vmatprep.subr.mxu0 0.0
    %128 = vmatpush1.msra.mxu0 %v112
    %129 = vmatprep.subr.mxu0 0.0
    %130 = vmatpush1.msra.mxu0 %v111
    %131 = vmatprep.subr.mxu0 0.0
    %132 = vmatpush1.msra.mxu0 %v110
    %133 = vmatprep.subr.mxu0 0.0
    %134 = vmatpush1.msra.mxu0 %v109
    %135 = vmatprep.subr.mxu0 0.0
    %136 = vmatpush1.msra.mxu0 %v108
    %137 = vmatprep.subr.mxu0 0.0
    %138 = vmatpush1.msra.mxu0 %v107
    %139 = vmatprep.subr.mxu0 0.0
    %140 = vmatpush1.msra.mxu0 %v106
    %141 = vmatprep.subr.mxu0 0.0
    %142 = vmatpush1.msra.mxu0 %v105
    %143 = vmatprep.subr.mxu0 0.0
    %144 = vmatpush1.msra.mxu0 %v104
    %145 = vmatprep.subr.mxu0 0.0
    %146 = vmatpush1.msra.mxu0 %v103
    %147 = vmatprep.subr.mxu0 0.0
    %148 = vmatpush1.msra.mxu0 %v102
    %149 = vmatprep.subr.mxu0 0.0
    %150 = vmatpush1.msra.mxu0 %v101
    %151 = vmatprep.subr.mxu0 0.0
    %152 = vmatpush1.msra.mxu0 %v100
    %153 = vmatprep.subr.mxu0 0.0
    %154 = vmatpush2.msra.mxu0 0.0
    %155 = vmatprep.subr.mxu0 0.0
    %156 = vmatpush2.msra.mxu0 0.0
    %157 = vmatprep.subr.mxu0 0.0
    %158 = vmatpush2.msra.mxu0 0.0
    %159 = vmatprep.subr.mxu0 0.0
    %160 = vmatpush2.msra.mxu0 0.0
    %161 = vmatprep.subr.mxu0 0.0
    %162 = vmatpush2.msra.mxu0 0.0
    %163 = vmatprep.subr.mxu0 0.0
    %164 = vmatpush2.msra.mxu0 0.0
    %165 = vmatprep.subr.mxu0 0.0
    %166 = vmatpush2.msra.mxu0 0.0
    %167 = vmatprep.subr.mxu0 0.0
    %168 = vmatpush2.msra.mxu0 0.0
    %169 = vmatprep.subr.mxu0 0.0
    %170 = vmatpush2.msra.mxu0 0.0
    %171 = vmatprep.subr.mxu0 0.0
    %172 = vmatpush2.msra.mxu0 0.0
    %173 = vmatprep.subr.mxu0 0.0
    %174 = vmatpush2.msra.mxu0 0.0
    %175 = vmatprep.subr.mxu0 0.0
    %176 = vmatpush2.msra.mxu0 0.0
    %177 = vmatprep.subr.mxu0 0.0
    %178 = vmatpush2.msra.mxu0 0.0
    %179 = vmatprep.subr.mxu0 0.0
    %180 = vmatpush2.msra.mxu0 0.0
    %181 = vmatprep.subr.mxu0 0.0
    %182 = vmatpush2.msra.mxu0 0.0
    %183 = vmatprep.subr.mxu0 0.0
    %184 = vmatpush2.msra.mxu0 0.0
    %185 = vmatprep.mubr.f32.mxu0 0.0
    %186 = vmatmul.mubr.f32.gmra.mxu0 %v92
    %v187 = vpop.f32.mrf.mxu0
    %v188 = vadd.f32 %v120, %v187
    %v189 = vpop.f32.mrf.mxu0
    %190 = vmatprep.mubr.f32.mxu0 0.0
    %191 = vmatmul.mubr.f32.gmra.mxu0 %v93
    %v192 = vpop.f32.mrf.mxu0
    %v193 = vadd.f32 %v120, %v192
    %v194 = vpop.f32.mrf.mxu0
    %195 = vmatprep.mubr.f32.mxu0 0.0
    %196 = vmatmul.mubr.f32.gmra.mxu0 %v94
    %v197 = vpop.f32.mrf.mxu0
    %v198 = vadd.f32 %v120, %v197
    %v199 = vpop.f32.mrf.mxu0
    %200 = vmatprep.mubr.f32.mxu0 0.0
    %201 = vmatmul.mubr.f32.gmra.mxu0 %v95
    %v202 = vpop.f32.mrf.mxu0
    %v203 = vadd.f32 %v120, %v202
    %v204 = vpop.f32.mrf.mxu0
    %205 = vmatprep.mubr.f32.mxu0 0.0
    %206 = vmatmul.mubr.f32.gmra.mxu0 %v96
    %v207 = vpop.f32.mrf.mxu0
    %v208 = vadd.f32 %v120, %v207
    %v209 = vpop.f32.mrf.mxu0
    %210 = vmatprep.mubr.f32.mxu0 0.0
    %211 = vmatmul.mubr.f32.gmra.mxu0 %v97
    %v212 = vpop.f32.mrf.mxu0
    %v213 = vadd.f32 %v120, %v212
    %v214 = vpop.f32.mrf.mxu0
    %215 = vmatprep.mubr.f32.mxu0 0.0
    %216 = vmatmul.mubr.f32.gmra.mxu0 %v98
    %v217 = vpop.f32.mrf.mxu0
    %v218 = vadd.f32 %v120, %v217
    %v219 = vpop.f32.mrf.mxu0
    %220 = vmatprep.mubr.f32.mxu0 0.0
    %221 = vmatmul.mubr.f32.gmra.mxu0 %v99
    %v222 = vpop.f32.mrf.mxu0
    %v223 = vadd.f32 %v120, %v222
    %v224 = vpop.f32.mrf.mxu0
    %225 = vdwg.mxu0
    %v226 = vmax.f32 %v188, 0.0
    %v227 = vmax.f32 %v193, 0.0
    %v228 = vmax.f32 %v198, 0.0
    %v229 = vmax.f32 %v203, 0.0
    %v230 = vmax.f32 %v208, 0.0
    %v231 = vmax.f32 %v213, 0.0
    %v232 = vmax.f32 %v218, 0.0
    %v233 = vmax.f32 %v223, 0.0
    %v234 = vld [vmem:[#allocation7] sm:$0xff]
    %v235 = vld [vmem:[#allocation7 + $0x8] sm:$0xff]
    %v236 = vld [vmem:[#allocation7 + $0x10] sm:$0xff]
    %v237 = vld [vmem:[#allocation7 + $0x18] sm:$0xff]
    %v238 = vld [vmem:[#allocation7 + $0x20] sm:$0xff]
    %v239 = vld [vmem:[#allocation7 + $0x28] sm:$0xff]
    %v240 = vld [vmem:[#allocation7 + $0x30] sm:$0xff]
    %v241 = vld [vmem:[#allocation7 + $0x38] sm:$0xff]
    %v242 = vld [vmem:[#allocation7 + $0x40] sm:$0xff]
    %v243 = vld [vmem:[#allocation7 + $0x48] sm:$0xff]
    %v244 = vld [vmem:[#allocation7 + $0x50] sm:$0xff]
    %v245 = vld [vmem:[#allocation7 + $0x58] sm:$0xff]
    %v246 = vld [vmem:[#allocation7 + $0x60] sm:$0xff]
    %v247 = vld [vmem:[#allocation7 + $0x68] sm:$0xff]
    %v248 = vld [vmem:[#allocation7 + $0x70] sm:$0xff]
    %v249 = vld [vmem:[#allocation7 + $0x78] sm:$0xff]
    %v250 = vld [vmem:[%s5 + $0x1] sm:$0x1]
    %v251 = vlaneseq
    %v252 = vshrl.u32 %v251, 7
    %v253 = vsub.s32 0, %v252
    %v254 = vrot.slane %v250, %v253
    %255 = vmatprep.subr.mxu0 0.0
    %256 = vmatpush1.msra.mxu0 %v249
    %257 = vmatprep.subr.mxu0 0.0
    %258 = vmatpush1.msra.mxu0 %v248
    %259 = vmatprep.subr.mxu0 0.0
    %260 = vmatpush1.msra.mxu0 %v247
    %261 = vmatprep.subr.mxu0 0.0
    %262 = vmatpush1.msra.mxu0 %v246
    %263 = vmatprep.subr.mxu0 0.0
    %264 = vmatpush1.msra.mxu0 %v245
    %265 = vmatprep.subr.mxu0 0.0
    %266 = vmatpush1.msra.mxu0 %v244
    %267 = vmatprep.subr.mxu0 0.0
    %268 = vmatpush1.msra.mxu0 %v243
    %269 = vmatprep.subr.mxu0 0.0
    %270 = vmatpush1.msra.mxu0 %v242
    %271 = vmatprep.subr.mxu0 0.0
    %272 = vmatpush1.msra.mxu0 %v241
    %273 = vmatprep.subr.mxu0 0.0
    %274 = vmatpush1.msra.mxu0 %v240
    %275 = vmatprep.subr.mxu0 0.0
    %276 = vmatpush1.msra.mxu0 %v239
    %277 = vmatprep.subr.mxu0 0.0
    %278 = vmatpush1.msra.mxu0 %v238
    %279 = vmatprep.subr.mxu0 0.0
    %280 = vmatpush1.msra.mxu0 %v237
    %281 = vmatprep.subr.mxu0 0.0
    %282 = vmatpush1.msra.mxu0 %v236
    %283 = vmatprep.subr.mxu0 0.0
    %284 = vmatpush1.msra.mxu0 %v235
    %285 = vmatprep.subr.mxu0 0.0
    %286 = vmatpush1.msra.mxu0 %v234
    %287 = vmatprep.subr.mxu0 0.0
    %288 = vmatpush2.msra.mxu0 0.0
    %289 = vmatprep.subr.mxu0 0.0
    %290 = vmatpush2.msra.mxu0 0.0
    %291 = vmatprep.subr.mxu0 0.0
    %292 = vmatpush2.msra.mxu0 0.0
    %293 = vmatprep.subr.mxu0 0.0
    %294 = vmatpush2.msra.mxu0 0.0
    %295 = vmatprep.subr.mxu0 0.0
    %296 = vmatpush2.msra.mxu0 0.0
    %297 = vmatprep.subr.mxu0 0.0
    %298 = vmatpush2.msra.mxu0 0.0
    %299 = vmatprep.subr.mxu0 0.0
    %300 = vmatpush2.msra.mxu0 0.0
    %301 = vmatprep.subr.mxu0 0.0
    %302 = vmatpush2.msra.mxu0 0.0
    %303 = vmatprep.subr.mxu0 0.0
    %304 = vmatpush2.msra.mxu0 0.0
    %305 = vmatprep.subr.mxu0 0.0
    %306 = vmatpush2.msra.mxu0 0.0
    %307 = vmatprep.subr.mxu0 0.0
    %308 = vmatpush2.msra.mxu0 0.0
    %309 = vmatprep.subr.mxu0 0.0
    %310 = vmatpush2.msra.mxu0 0.0
    %311 = vmatprep.subr.mxu0 0.0
    %312 = vmatpush2.msra.mxu0 0.0
    %313 = vmatprep.subr.mxu0 0.0
    %314 = vmatpush2.msra.mxu0 0.0
    %315 = vmatprep.subr.mxu0 0.0
    %316 = vmatpush2.msra.mxu0 0.0
    %317 = vmatprep.subr.mxu0 0.0
    %318 = vmatpush2.msra.mxu0 0.0
    %319 = vmatprep.mubr.f32.mxu0 0.0
    %320 = vmatmul.mubr.f32.gmra.mxu0 %v226
    %v321 = vpop.f32.mrf.mxu0
    %v322 = vadd.f32 %v254, %v321
    %v323 = vpop.f32.mrf.mxu0
    %324 = vmatprep.mubr.f32.mxu0 0.0
    %325 = vmatmul.mubr.f32.gmra.mxu0 %v227
    %v326 = vpop.f32.mrf.mxu0
    %v327 = vadd.f32 %v254, %v326
    %v328 = vpop.f32.mrf.mxu0
    %329 = vmatprep.mubr.f32.mxu0 0.0
    %330 = vmatmul.mubr.f32.gmra.mxu0 %v228
    %v331 = vpop.f32.mrf.mxu0
    %v332 = vadd.f32 %v254, %v331
    %v333 = vpop.f32.mrf.mxu0
    %334 = vmatprep.mubr.f32.mxu0 0.0
    %335 = vmatmul.mubr.f32.gmra.mxu0 %v229
    %v336 = vpop.f32.mrf.mxu0
    %v337 = vadd.f32 %v254, %v336
    %v338 = vpop.f32.mrf.mxu0
    %339 = vmatprep.mubr.f32.mxu0 0.0
    %340 = vmatmul.mubr.f32.gmra.mxu0 %v230
    %v341 = vpop.f32.mrf.mxu0
    %v342 = vadd.f32 %v254, %v341
    %v343 = vpop.f32.mrf.mxu0
    %344 = vmatprep.mubr.f32.mxu0 0.0
    %345 = vmatmul.mubr.f32.gmra.mxu0 %v231
    %v346 = vpop.f32.mrf.mxu0
    %v347 = vadd.f32 %v254, %v346
    %v348 = vpop.f32.mrf.mxu0
    %349 = vmatprep.mubr.f32.mxu0 0.0
    %350 = vmatmul.mubr.f32.gmra.mxu0 %v232
    %v351 = vpop.f32.mrf.mxu0
    %v352 = vadd.f32 %v254, %v351
    %v353 = vpop.f32.mrf.mxu0
    %354 = vmatprep.mubr.f32.mxu0 0.0
    %355 = vmatmul.mubr.f32.gmra.mxu0 %v233
    %v356 = vpop.f32.mrf.mxu0
    %v357 = vadd.f32 %v254, %v356
    %v358 = vpop.f32.mrf.mxu0
    %359 = vdwg.mxu0
    %v360 = vmax.f32 %v322, 0.0
    %v361 = vmax.f32 %v327, 0.0
    %v362 = vmax.f32 %v332, 0.0
    %v363 = vmax.f32 %v337, 0.0
    %v364 = vmax.f32 %v342, 0.0
    %v365 = vmax.f32 %v347, 0.0
    %v366 = vmax.f32 %v352, 0.0
    %v367 = vmax.f32 %v357, 0.0
    %v368 = vld [vmem:[#allocation8] sm:$0xff]
    %v369 = vld [vmem:[#allocation8 + $0x8] sm:$0xff]
    %v370 = vld [vmem:[#allocation8 + $0x10] sm:$0xff]
    %v371 = vld [vmem:[#allocation8 + $0x18] sm:$0xff]
    %v372 = vld [vmem:[#allocation8 + $0x20] sm:$0xff]
    %v373 = vld [vmem:[#allocation8 + $0x28] sm:$0xff]
    %v374 = vld [vmem:[#allocation8 + $0x30] sm:$0xff]
    %v375 = vld [vmem:[#allocation8 + $0x38] sm:$0xff]
    %v376 = vld [vmem:[#allocation8 + $0x40] sm:$0xff]
    %v377 = vld [vmem:[#allocation8 + $0x48] sm:$0xff]
    %v378 = vld [vmem:[#allocation8 + $0x50] sm:$0xff]
    %v379 = vld [vmem:[#allocation8 + $0x58] sm:$0xff]
    %v380 = vld [vmem:[#allocation8 + $0x60] sm:$0xff]
    %v381 = vld [vmem:[#allocation8 + $0x68] sm:$0xff]
    %v382 = vld [vmem:[#allocation8 + $0x70] sm:$0xff]
    %v383 = vld [vmem:[#allocation8 + $0x78] sm:$0xff]
    %v384 = vld [vmem:[%s5 + $0x2] sm:$0x1]
    %v385 = vlaneseq
    %v386 = vshrl.u32 %v385, 7
    %v387 = vsub.s32 0, %v386
    %v388 = vrot.slane %v384, %v387
    %389 = vmatprep.subr.mxu0 0.0
    %390 = vmatpush1.msra.mxu0 %v383
    %391 = vmatprep.subr.mxu0 0.0
    %392 = vmatpush1.msra.mxu0 %v382
    %393 = vmatprep.subr.mxu0 0.0
    %394 = vmatpush1.msra.mxu0 %v381
    %395 = vmatprep.subr.mxu0 0.0
    %396 = vmatpush1.msra.mxu0 %v380
    %397 = vmatprep.subr.mxu0 0.0
    %398 = vmatpush1.msra.mxu0 %v379
    %399 = vmatprep.subr.mxu0 0.0
    %400 = vmatpush1.msra.mxu0 %v378
    %401 = vmatprep.subr.mxu0 0.0
    %402 = vmatpush1.msra.mxu0 %v377
    %403 = vmatprep.subr.mxu0 0.0
    %404 = vmatpush1.msra.mxu0 %v376
    %405 = vmatprep.subr.mxu0 0.0
    %406 = vmatpush1.msra.mxu0 %v375
    %407 = vmatprep.subr.mxu0 0.0
    %408 = vmatpush1.msra.mxu0 %v374
    %409 = vmatprep.subr.mxu0 0.0
    %410 = vmatpush1.msra.mxu0 %v373
    %411 = vmatprep.subr.mxu0 0.0
    %412 = vmatpush1.msra.mxu0 %v372
    %413 = vmatprep.subr.mxu0 0.0
    %414 = vmatpush1.msra.mxu0 %v371
    %415 = vmatprep.subr.mxu0 0.0
    %416 = vmatpush1.msra.mxu0 %v370
    %417 = vmatprep.subr.mxu0 0.0
    %418 = vmatpush1.msra.mxu0 %v369
    %419 = vmatprep.subr.mxu0 0.0
    %420 = vmatpush1.msra.mxu0 %v368
    %421 = vmatprep.subr.mxu0 0.0
    %422 = vmatpush2.msra.mxu0 0.0
    %423 = vmatprep.subr.mxu0 0.0
    %424 = vmatpush2.msra.mxu0 0.0
    %425 = vmatprep.subr.mxu0 0.0
    %426 = vmatpush2.msra.mxu0 0.0
    %427 = vmatprep.subr.mxu0 0.0
    %428 = vmatpush2.msra.mxu0 0.0
    %429 = vmatprep.subr.mxu0 0.0
    %430 = vmatpush2.msra.mxu0 0.0
    %431 = vmatprep.subr.mxu0 0.0
    %432 = vmatpush2.msra.mxu0 0.0
    %433 = vmatprep.subr.mxu0 0.0
    %434 = vmatpush2.msra.mxu0 0.0
    %435 = vmatprep.subr.mxu0 0.0
    %436 = vmatpush2.msra.mxu0 0.0
    %437 = vmatprep.subr.mxu0 0.0
    %438 = vmatpush2.msra.mxu0 0.0
    %439 = vmatprep.subr.mxu0 0.0
    %440 = vmatpush2.msra.mxu0 0.0
    %441 = vmatprep.subr.mxu0 0.0
    %442 = vmatpush2.msra.mxu0 0.0
    %443 = vmatprep.subr.mxu0 0.0
    %444 = vmatpush2.msra.mxu0 0.0
    %445 = vmatprep.subr.mxu0 0.0
    %446 = vmatpush2.msra.mxu0 0.0
    %447 = vmatprep.subr.mxu0 0.0
    %448 = vmatpush2.msra.mxu0 0.0
    %449 = vmatprep.subr.mxu0 0.0
    %450 = vmatpush2.msra.mxu0 0.0
    %451 = vmatprep.subr.mxu0 0.0
    %452 = vmatpush2.msra.mxu0 0.0
    %453 = vmatprep.mubr.f32.mxu0 0.0
    %454 = vmatmul.mubr.f32.gmra.mxu0 %v360
    %v455 = vpop.f32.mrf.mxu0
    %v456 = vadd.f32 %v388, %v455
    %v457 = vpop.f32.mrf.mxu0
    %458 = vmatprep.mubr.f32.mxu0 0.0
    %459 = vmatmul.mubr.f32.gmra.mxu0 %v361
    %v460 = vpop.f32.mrf.mxu0
    %v461 = vadd.f32 %v388, %v460
    %v462 = vpop.f32.mrf.mxu0
    %463 = vmatprep.mubr.f32.mxu0 0.0
    %464 = vmatmul.mubr.f32.gmra.mxu0 %v362
    %v465 = vpop.f32.mrf.mxu0
    %v466 = vadd.f32 %v388, %v465
    %v467 = vpop.f32.mrf.mxu0
    %468 = vmatprep.mubr.f32.mxu0 0.0
    %469 = vmatmul.mubr.f32.gmra.mxu0 %v363
    %v470 = vpop.f32.mrf.mxu0
    %v471 = vadd.f32 %v388, %v470
    %v472 = vpop.f32.mrf.mxu0
    %473 = vmatprep.mubr.f32.mxu0 0.0
    %474 = vmatmul.mubr.f32.gmra.mxu0 %v364
    %v475 = vpop.f32.mrf.mxu0
    %v476 = vadd.f32 %v388, %v475
    %v477 = vpop.f32.mrf.mxu0
    %478 = vmatprep.mubr.f32.mxu0 0.0
    %479 = vmatmul.mubr.f32.gmra.mxu0 %v365
    %v480 = vpop.f32.mrf.mxu0
    %v481 = vadd.f32 %v388, %v480
    %v482 = vpop.f32.mrf.mxu0
    %483 = vmatprep.mubr.f32.mxu0 0.0
    %484 = vmatmul.mubr.f32.gmra.mxu0 %v366
    %v485 = vpop.f32.mrf.mxu0
    %v486 = vadd.f32 %v388, %v485
    %v487 = vpop.f32.mrf.mxu0
    %488 = vmatprep.mubr.f32.mxu0 0.0
    %489 = vmatmul.mubr.f32.gmra.mxu0 %v367
    %v490 = vpop.f32.mrf.mxu0
    %v491 = vadd.f32 %v388, %v490
    %v492 = vpop.f32.mrf.mxu0
    %493 = vdwg.mxu0
    %v494 = vmax.f32 %v456, 0.0
    %v495 = vmax.f32 %v461, 0.0
    %v496 = vmax.f32 %v466, 0.0
    %v497 = vmax.f32 %v471, 0.0
    %v498 = vmax.f32 %v476, 0.0
    %v499 = vmax.f32 %v481, 0.0
    %v500 = vmax.f32 %v486, 0.0
    %v501 = vmax.f32 %v491, 0.0
    %v502 = vld [vmem:[#allocation10] sm:$0xff]
    %v503 = vld [vmem:[#allocation10 + $0x8] sm:$0xff]
    %v504 = vld [vmem:[#allocation10 + $0x10] sm:$0xff]
    %v505 = vld [vmem:[#allocation10 + $0x18] sm:$0xff]
    %v506 = vld [vmem:[#allocation10 + $0x20] sm:$0xff]
    %v507 = vld [vmem:[#allocation10 + $0x28] sm:$0xff]
    %v508 = vld [vmem:[#allocation10 + $0x30] sm:$0xff]
    %v509 = vld [vmem:[#allocation10 + $0x38] sm:$0xff]
    %v510 = vld [vmem:[#allocation10 + $0x40] sm:$0xff]
    %v511 = vld [vmem:[#allocation10 + $0x48] sm:$0xff]
    %v512 = vld [vmem:[#allocation10 + $0x50] sm:$0xff]
    %v513 = vld [vmem:[#allocation10 + $0x58] sm:$0xff]
    %v514 = vld [vmem:[#allocation10 + $0x60] sm:$0xff]
    %v515 = vld [vmem:[#allocation10 + $0x68] sm:$0xff]
    %v516 = vld [vmem:[#allocation10 + $0x70] sm:$0xff]
    %v517 = vld [vmem:[#allocation10 + $0x78] sm:$0xff]
    %v518 = vld [vmem:[%s5 + $0x3] sm:$0x1]
    %v519 = vlaneseq
    %v520 = vshrl.u32 %v519, 7
    %v521 = vsub.s32 0, %v520
    %v522 = vrot.slane %v518, %v521
    %523 = vmatprep.subr.mxu0 0.0
    %524 = vmatpush1.msra.mxu0 %v517
    %525 = vmatprep.subr.mxu0 0.0
    %526 = vmatpush1.msra.mxu0 %v516
    %527 = vmatprep.subr.mxu0 0.0
    %528 = vmatpush1.msra.mxu0 %v515
    %529 = vmatprep.subr.mxu0 0.0
    %530 = vmatpush1.msra.mxu0 %v514
    %531 = vmatprep.subr.mxu0 0.0
    %532 = vmatpush1.msra.mxu0 %v513
    %533 = vmatprep.subr.mxu0 0.0
    %534 = vmatpush1.msra.mxu0 %v512
    %535 = vmatprep.subr.mxu0 0.0
    %536 = vmatpush1.msra.mxu0 %v511
    %537 = vmatprep.subr.mxu0 0.0
    %538 = vmatpush1.msra.mxu0 %v510
    %539 = vmatprep.subr.mxu0 0.0
    %540 = vmatpush1.msra.mxu0 %v509
    %541 = vmatprep.subr.mxu0 0.0
    %542 = vmatpush1.msra.mxu0 %v508
    %543 = vmatprep.subr.mxu0 0.0
    %544 = vmatpush1.msra.mxu0 %v507
    %545 = vmatprep.subr.mxu0 0.0
    %546 = vmatpush1.msra.mxu0 %v506
    %547 = vmatprep.subr.mxu0 0.0
    %548 = vmatpush1.msra.mxu0 %v505
    %549 = vmatprep.subr.mxu0 0.0
    %550 = vmatpush1.msra.mxu0 %v504
    %551 = vmatprep.subr.mxu0 0.0
    %552 = vmatpush1.msra.mxu0 %v503
    %553 = vmatprep.subr.mxu0 0.0
    %554 = vmatpush1.msra.mxu0 %v502
    %555 = vmatprep.subr.mxu0 0.0
    %556 = vmatpush2.msra.mxu0 0.0
    %557 = vmatprep.subr.mxu0 0.0
    %558 = vmatpush2.msra.mxu0 0.0
    %559 = vmatprep.subr.mxu0 0.0
    %560 = vmatpush2.msra.mxu0 0.0
    %561 = vmatprep.subr.mxu0 0.0
    %562 = vmatpush2.msra.mxu0 0.0
    %563 = vmatprep.subr.mxu0 0.0
    %564 = vmatpush2.msra.mxu0 0.0
    %565 = vmatprep.subr.mxu0 0.0
    %566 = vmatpush2.msra.mxu0 0.0
    %567 = vmatprep.subr.mxu0 0.0
    %568 = vmatpush2.msra.mxu0 0.0
    %569 = vmatprep.subr.mxu0 0.0
    %570 = vmatpush2.msra.mxu0 0.0
    %571 = vmatprep.subr.mxu0 0.0
    %572 = vmatpush2.msra.mxu0 0.0
    %573 = vmatprep.subr.mxu0 0.0
    %574 = vmatpush2.msra.mxu0 0.0
    %575 = vmatprep.subr.mxu0 0.0
    %576 = vmatpush2.msra.mxu0 0.0
    %577 = vmatprep.subr.mxu0 0.0
    %578 = vmatpush2.msra.mxu0 0.0
    %579 = vmatprep.subr.mxu0 0.0
    %580 = vmatpush2.msra.mxu0 0.0
    %581 = vmatprep.subr.mxu0 0.0
    %582 = vmatpush2.msra.mxu0 0.0
    %583 = vmatprep.subr.mxu0 0.0
    %584 = vmatpush2.msra.mxu0 0.0
    %585 = vmatprep.subr.mxu0 0.0
    %586 = vmatpush2.msra.mxu0 0.0
    %587 = vmatprep.mubr.f32.mxu0 0.0
    %588 = vmatmul.mubr.f32.gmra.mxu0 %v494
    %v589 = vpop.f32.mrf.mxu0
    %v590 = vadd.f32 %v522, %v589
    %v591 = vpop.f32.mrf.mxu0
    %592 = vmatprep.mubr.f32.mxu0 0.0
    %593 = vmatmul.mubr.f32.gmra.mxu0 %v495
    %v594 = vpop.f32.mrf.mxu0
    %v595 = vadd.f32 %v522, %v594
    %v596 = vpop.f32.mrf.mxu0
    %597 = vmatprep.mubr.f32.mxu0 0.0
    %598 = vmatmul.mubr.f32.gmra.mxu0 %v496
    %v599 = vpop.f32.mrf.mxu0
    %v600 = vadd.f32 %v522, %v599
    %v601 = vpop.f32.mrf.mxu0
    %602 = vmatprep.mubr.f32.mxu0 0.0
    %603 = vmatmul.mubr.f32.gmra.mxu0 %v497
    %v604 = vpop.f32.mrf.mxu0
    %v605 = vadd.f32 %v522, %v604
    %v606 = vpop.f32.mrf.mxu0
    %607 = vmatprep.mubr.f32.mxu0 0.0
    %608 = vmatmul.mubr.f32.gmra.mxu0 %v498
    %v609 = vpop.f32.mrf.mxu0
    %v610 = vadd.f32 %v522, %v609
    %v611 = vpop.f32.mrf.mxu0
    %612 = vmatprep.mubr.f32.mxu0 0.0
    %613 = vmatmul.mubr.f32.gmra.mxu0 %v499
    %v614 = vpop.f32.mrf.mxu0
    %v615 = vadd.f32 %v522, %v614
    %v616 = vpop.f32.mrf.mxu0
    %617 = vmatprep.mubr.f32.mxu0 0.0
    %618 = vmatmul.mubr.f32.gmra.mxu0 %v500
    %v619 = vpop.f32.mrf.mxu0
    %v620 = vadd.f32 %v522, %v619
    %v621 = vpop.f32.mrf.mxu0
    %622 = vmatprep.mubr.f32.mxu0 0.0
    %623 = vmatmul.mubr.f32.gmra.mxu0 %v501
    %v624 = vpop.f32.mrf.mxu0
    %v625 = vadd.f32 %v522, %v624
    %v626 = vpop.f32.mrf.mxu0
    %627 = vdwg.mxu0
    %628 = vst [vmem:[#allocation11] sm:$0xff] %v590
    %629 = vst [vmem:[#allocation11 + $0x8] sm:$0xff] %v595
    %630 = vst [vmem:[#allocation11 + $0x10] sm:$0xff] %v600
    %631 = vst [vmem:[#allocation11 + $0x18] sm:$0xff] %v605
    %632 = vst [vmem:[#allocation11 + $0x20] sm:$0xff] %v610
    %633 = vst [vmem:[#allocation11 + $0x28] sm:$0xff] %v615
    %634 = vst [vmem:[#allocation11 + $0x30] sm:$0xff] %v620
    %635 = vst [vmem:[#allocation11 + $0x38] sm:$0xff] %v625
    // Predicated region
    $region46: #{tpu_custom_call.1} parent=1 // pred_check
      _
    $region47: #{tpu_custom_call.1} parent=1 // pred_check_branch
      %637 = sbr.rel (0) target = $region49
    $region48: #{tpu_custom_call.1} parent=1 // pred_region
      %s639 = ssub.s32 1024, 1024
      %640 = vsyncadd [#allocation4], %s639
      %s641 = sshll.u32 [#allocation11], 4
      %s642 = int_to_ptr.vmem [resolvable:$true] %s641
      %647 = dma.vmem_to_hbm [thread:$0]  %s642, 1024, %s6, [#allocation4], 128, 128, 8
    $region49: #{tpu_custom_call.1} parent=1 // pred_fallthru
      _
    // Predicated region
    $region50: #{tpu_custom_call.1} parent=1 // pred_check
      _
    $region51: #{tpu_custom_call.1} parent=1 // pred_check_branch
      %649 = sbr.rel (0) target = $region53
    $region52: #{tpu_custom_call.1} parent=1 // pred_region
      %650 = dma.done [#allocation4], 1024
    $region53: #{tpu_custom_call.1} parent=1 // pred_fallthru
      _
    %651 = vsyncpa [#allocation3], 1
    %652 = vsyncpa [#allocation6], 1
    %653 = vsyncpa [#allocation9], 1
    %654 = vsyncpa [#allocation4], 1

</llo_original>
